<compile_context>
chip_gen: v7x
topology: tpu7x:2x2x1
jax: 0.10.0
libtpu: 0.0.40
codegen_flags: <defaults>
</compile_context>

<pallas_src>
import jax
import jax.numpy as jnp
from jax.experimental import pallas as pl
from jax.experimental.pallas import tpu as pltpu

# ---- static synthetic-model dims (B x I x 4 input, as the wrapper expects) --
B = 2      # batch
I = 16     # sequence length
C = 4      # one-hot channels (A/C/G/T)
K = 5      # conv kernel width ('same' padding)
H = 32     # conv hidden channels
T = 3      # number of tasks
TASK_INDEX = None   # set to an int in [0, T) to explain a single task


def _round_up(v, m):
    return ((v + m - 1) // m) * m


def _wrapper_binary_kernel(x2_ref, wbig_ref, bbig_ref, wrow_ref, out_ref):
    """One batch tile of: sum(relu(x2 @ W_big + b_big) * w_row, axis=-1).

    x2_ref  : (bt, KP)     bf16 flattened one-hot sequences (K padded to 128)
    wbig_ref: (KP, I*H)    bf16 block-Toeplitz conv weights ('same' pad folded)
    bbig_ref: (1, I*H)     f32 conv bias tiled over sequence positions
    wrow_ref: (1, I*H)     f32 mean-pool + FC + task-slice/sum folded weights
    out_ref : (bt, 1)      f32 aggregated logits (scalar bias added in wrapper)
    """
    acc = jnp.dot(x2_ref[...], wbig_ref[...],
                  preferred_element_type=jnp.float32)            # MXU, (bt, I*H)
    hidden = jnp.maximum(acc + bbig_ref[...], 0.0)               # VPU
    # N=1 matvec done as VPU mul + XLU cross-lane reduce (keeps MXU free).
    out_ref[...] = jnp.sum(hidden * wrow_ref[...], axis=-1, keepdims=True)


def fold_wrapper_binary_params(w_conv, b_conv, w_fc, b_fc, seq_len,
                               task_index=None):
    """One-time weight fold — call at model-load time, NOT per forward call."""
    k, c, h = w_conv.shape
    pad = (k - 1) // 2

    # Block-Toeplitz conv matrix for Conv1d cross-correlation:
    #   out[b, i, hh] = sum_{j, cc} x[b, j, cc] * w_conv[j - i + pad, cc, hh]
    # => W_big[j*C + cc, i*H + hh] = w_conv[j - i + pad, cc, hh]
    # (zero where the tap falls outside the kernel => implements 'same' pad).
    j_in = jnp.arange(seq_len)
    i_out = jnp.arange(seq_len)
    tap = j_in[:, None] - i_out[None, :] + pad                   # (j, i)
    valid = ((tap >= 0) & (tap < k)).astype(w_conv.dtype)
    w_gather = w_conv[jnp.clip(tap, 0, k - 1)] * valid[:, :, None, None]
    w_big = jnp.transpose(w_gather, (0, 2, 1, 3)).reshape(seq_len * c,
                                                          seq_len * h)

    # Zero-pad the contraction dim to a full 128-lane multiple (unmasked vreg
    # loads, fully populated MXU K dim).  Done once here, on the weights.
    kc = seq_len * c
    kp = _round_up(kc, 128)
    w_big = jnp.pad(w_big, ((0, kp - kc), (0, 0)))

    b_big = jnp.tile(b_conv.reshape(1, h), (1, seq_len))         # (1, I*H)

    # FC head + optional task slice + task-sum + 1/I mean-pool scale.
    b_fc2 = b_fc.reshape(1, -1)
    if task_index is not None:
        w_sel = w_fc[:, task_index:task_index + 1]               # (H, 1)
        b_eff = b_fc2[:, task_index:task_index + 1]              # (1, 1)
    else:
        w_sel = jnp.sum(w_fc, axis=1, keepdims=True)             # (H, 1)
        b_eff = jnp.sum(b_fc2, axis=1, keepdims=True)            # (1, 1)
    w_row = jnp.tile((w_sel / seq_len).reshape(1, h), (1, seq_len))  # (1, I*H)

    return (w_big.astype(jnp.bfloat16),     # MXU RHS, bf16
            b_big.astype(jnp.float32),
            w_row.astype(jnp.float32),
            b_eff.astype(jnp.float32))


def wrapper_binary_forward(x, folded, batch_tile=None):
    """x: (B, I, C) float one-hot sequences -> (B, 1) aggregated logit."""
    w_big, b_big, w_row, b_eff = folded
    b_total, seq_len, c = x.shape
    kp, ih = w_big.shape

    # (B, I, C) -> (B, I*C): contiguous reshape; one-hot is lossless in bf16.
    x2 = x.reshape(b_total, seq_len * c).astype(jnp.bfloat16)
    if kp != seq_len * c:
        x2 = jnp.pad(x2, ((0, 0), (0, kp - seq_len * c)))

    # Batch tiling: big tiles (amortize per-step fixed cost + RHS weight push)
    # but >= 2 programs for medium batches so v7x's 2nd TensorCore gets work.
    if batch_tile is None:
        if b_total <= 16:
            batch_tile = 16
        else:
            batch_tile = min(1024, _round_up(pl.cdiv(b_total, 2), 16))
    else:
        batch_tile = _round_up(batch_tile, 16)
    n_tiles = pl.cdiv(b_total, batch_tile)
    b_padded = n_tiles * batch_tile
    if b_padded != b_total:
        x2 = jnp.pad(x2, ((0, b_padded - b_total), (0, 0)))

    out = pl.pallas_call(
        _wrapper_binary_kernel,
        out_shape=jax.ShapeDtypeStruct((b_padded, 1), jnp.float32),
        grid=(n_tiles,),
        in_specs=[
            pl.BlockSpec((batch_tile, kp), lambda i: (i, 0)),
            pl.BlockSpec((kp, ih), lambda i: (0, 0)),
            pl.BlockSpec((1, ih), lambda i: (0, 0)),
            pl.BlockSpec((1, ih), lambda i: (0, 0)),
        ],
        out_specs=pl.BlockSpec((batch_tile, 1), lambda i: (i, 0)),
        compiler_params=pltpu.CompilerParams(
            dimension_semantics=("parallel",)),
    )(x2, w_big, b_big, w_row)

    # Folded scalar bias added here (cheaper than a padded (1,1) VMEM block).
    # Padded batch rows (garbage) are sliced off first — keep this slice.
    return out[:b_total] + b_eff


def _reference(x, w_conv, b_conv, w_fc, b_fc, task_index=None):
    """Pure-JAX f32 reference of the same forward pass (sanity check only)."""
    pad = (w_conv.shape[0] - 1) // 2
    seq_len = x.shape[1]
    xp = jnp.pad(x, ((0, 0), (pad, pad), (0, 0)))
    acc = jnp.zeros((x.shape[0], seq_len, w_conv.shape[-1]), jnp.float32)
    for k in range(w_conv.shape[0]):
        acc = acc + jnp.einsum("bic,ch->bih", xp[:, k:k + seq_len, :],
                               w_conv[k])
    acc = acc + b_conv.reshape(1, 1, -1)
    pooled = jnp.mean(jnp.maximum(acc, 0.0), axis=1)
    logits = pooled @ w_fc + b_fc.reshape(1, -1)
    if task_index is not None:
        logits = logits[:, task_index:task_index + 1]
    return jnp.sum(logits, axis=1, keepdims=True)


if __name__ == "__main__":
    key = jax.random.PRNGKey(0)
    k_x, k_wc, k_bc, k_wf, k_bf = jax.random.split(key, 5)

    # Deterministic synthetic one-hot input, shape B x I x 4.
    idx = jax.random.randint(k_x, (B, I), 0, C)
    x = jax.nn.one_hot(idx, C, dtype=jnp.float32)               # (B, I, C)

    # Deterministic synthetic parameters for the inner BinaryPredictor.
    w_conv = 0.1 * jax.random.normal(k_wc, (K, C, H), jnp.float32)
    b_conv = 0.1 * jax.random.normal(k_bc, (1, H), jnp.float32)
    w_fc = 0.1 * jax.random.normal(k_wf, (H, T), jnp.float32)
    b_fc = 0.1 * jax.random.normal(k_bf, (1, T), jnp.float32)

    # Fold once ("model-load time"), reuse on every forward call.
    folded = fold_wrapper_binary_params(w_conv, b_conv, w_fc, b_fc,
                                        seq_len=I, task_index=TASK_INDEX)
    folded = jax.block_until_ready(folded)

    out = wrapper_binary_forward(x, folded)
    out = jax.block_until_ready(out)

    ref = _reference(x, w_conv, b_conv, w_fc, b_fc, task_index=TASK_INDEX)
    assert out.shape == (B, 1)
    # Tolerance accounts for bf16 MXU operands (f32 accumulation).
    assert jnp.allclose(out, ref, atol=1e-2, rtol=1e-2), (
        f"max abs diff {jnp.max(jnp.abs(out - ref))}")

    print("KERNEL_OK")
</pallas_src>

<mosaic_0001>
module attributes {stable_mosaic.version = 11 : i64} {
  func.func @_wrapper_binary_kernel(%arg0: i32, %arg1: memref<16x128xbf16, #tpu.memory_space<vmem>>, %arg2: memref<128x512xbf16, #tpu.memory_space<vmem>>, %arg3: memref<1x512xf32, #tpu.memory_space<vmem>>, %arg4: memref<1x512xf32, #tpu.memory_space<vmem>>, %arg5: memref<16x1xf32, #tpu.memory_space<vmem>>) attributes {dimension_semantics = [#tpu.dimension_semantics<parallel>], iteration_bounds = array<i64: 1>, scalar_prefetch = 0 : i64, scratch_operands = 0 : i64, tpu.core_type = #tpu.core_type<tc>, window_params = [{transform_indices = @transform_0, window_bounds = array<i64: 16, 128>}, {pipeline_mode = #tpu.pipeline_mode<synchronous>, transform_indices = @transform_1, window_bounds = array<i64: 128, 512>}, {pipeline_mode = #tpu.pipeline_mode<synchronous>, transform_indices = @transform_2, window_bounds = array<i64: 1, 512>}, {pipeline_mode = #tpu.pipeline_mode<synchronous>, transform_indices = @transform_3, window_bounds = array<i64: 1, 512>}, {transform_indices = @transform_4, window_bounds = array<i64: 16, 1>}]} {
    %c0 = arith.constant 0 : index
    %c0_0 = arith.constant 0 : index
    %0 = vector.load %arg1[%c0, %c0_0] : memref<16x128xbf16, #tpu.memory_space<vmem>>, vector<16x128xbf16>
    %c0_1 = arith.constant 0 : index
    %c0_2 = arith.constant 0 : index
    %1 = vector.load %arg2[%c0_1, %c0_2] : memref<128x512xbf16, #tpu.memory_space<vmem>>, vector<128x512xbf16>
    %cst = arith.constant dense<0.000000e+00> : vector<16x512xf32>
    %2 = tpu.matmul %0, %1, %cst {dimension_numbers = #tpu.dot_dimension_numbers<[1], [0], [0], [1], [0, 0, 1, 1], [], []>} : vector<16x128xbf16>, vector<128x512xbf16>, vector<16x512xf32> -> vector<16x512xf32>
    %c0_3 = arith.constant 0 : index
    %c0_4 = arith.constant 0 : index
    %3 = vector.load %arg3[%c0_3, %c0_4] : memref<1x512xf32, #tpu.memory_space<vmem>>, vector<1x512xf32>
    %4 = vector.broadcast %3 : vector<1x512xf32> to vector<16x512xf32>
    %5 = arith.addf %2, %4 : vector<16x512xf32>
    %cst_5 = arith.constant 0.000000e+00 : f32
    %6 = vector.broadcast %cst_5 : f32 to vector<16x512xf32>
    %7 = arith.maximumf %5, %6 : vector<16x512xf32>
    %c0_6 = arith.constant 0 : index
    %c0_7 = arith.constant 0 : index
    %8 = vector.load %arg4[%c0_6, %c0_7] : memref<1x512xf32, #tpu.memory_space<vmem>>, vector<1x512xf32>
    %9 = vector.broadcast %8 : vector<1x512xf32> to vector<16x512xf32>
    %10 = arith.mulf %7, %9 : vector<16x512xf32>
    %cst_8 = arith.constant dense<0.000000e+00> : vector<16xf32>
    %11 = vector.multi_reduction <add>, %10, %cst_8 [1] : vector<16x512xf32> to vector<16xf32>
    %12 = vector.shape_cast %11 : vector<16xf32> to vector<16x1xf32>
    %c0_9 = arith.constant 0 : index
    %c0_10 = arith.constant 0 : index
    %13 = vector.load %arg5[%c0_9, %c0_10] : memref<16x1xf32, #tpu.memory_space<vmem>>, vector<16x1xf32>
    tpu.vector_store %arg5[%c0_9, %c0_10], %12 {strides = array<i32>} : memref<16x1xf32, #tpu.memory_space<vmem>>, vector<16x1xf32>,
    return
  }
  func.func @transform_0(%arg0: i32) -> (i32, i32) {
    %c0_i32 = arith.constant 0 : i32
    %c0_i32_0 = arith.constant 0 : i32
    return %arg0, %c0_i32 : i32, i32
  }
  func.func @transform_1(%arg0: i32) -> (i32, i32) {
    %c0_i32 = arith.constant 0 : i32
    %c0_i32_0 = arith.constant 0 : i32
    %c0_i32_1 = arith.constant 0 : i32
    return %c0_i32, %c0_i32_0 : i32, i32
  }
  func.func @transform_2(%arg0: i32) -> (i32, i32) {
    %c0_i32 = arith.constant 0 : i32
    %c0_i32_0 = arith.constant 0 : i32
    %c0_i32_1 = arith.constant 0 : i32
    return %c0_i32, %c0_i32_0 : i32, i32
  }
  func.func @transform_3(%arg0: i32) -> (i32, i32) {
    %c0_i32 = arith.constant 0 : i32
    %c0_i32_0 = arith.constant 0 : i32
    %c0_i32_1 = arith.constant 0 : i32
    return %c0_i32, %c0_i32_0 : i32, i32
  }
  func.func @transform_4(%arg0: i32) -> (i32, i32) {
    %c0_i32 = arith.constant 0 : i32
    %c0_i32_0 = arith.constant 0 : i32
    return %arg0, %c0_i32 : i32, i32
  }
}

</mosaic_0001>

<llo_original>
// kernel: tpu_custom_call.1
$region0: #{tpu_custom_call.1}
  #allocation0 [shape = 'u32[]', space=smem, size = 0x4, offset = 0x4, fixed_abs, tag = 'smem constant byte address 0x4 - core index']
  #allocation1 [shape = 'u32[144,128]{1,0:T(1,128)}', space=vmem, size = 0x12000, scoped, tag = 'internal scratch']
  %s0 = inlined_call_operand.hbm [shape: bf16[16,128], index: 0, kind: input, shape index: {}]
  %s1 = inlined_call_operand.hbm [shape: bf16[128,512], index: 1, kind: input, shape index: {}]
  %s2 = inlined_call_operand.vmem [shape: f32[1,512], index: 2, kind: input, shape index: {}]
  %s3 = inlined_call_operand.vmem [shape: f32[1,512], index: 3, kind: input, shape index: {}]
  %s4 = inlined_call_operand.vmem [shape: f32[16,1], index: 4, kind: output, shape index: {}]
  %s5 = sld [smem:[#allocation0]]
  $region34: #{tpu_custom_call.1} parent=0
    _
  %s7 = ssub.s32 1, %s5
  %s8 = scalar_select 0, %s7, %s5
  $region1: #{tpu_custom_call.1} parent=0
    #allocation2 [shape = 'u8[4096]{0}', space=vmem, size = 0x1000, scoped, tag = 'input window, operand 0, single buffered']
    #allocation3 [shape = 's32[1]{0}', space=sflag, size = 0x4, scoped, tag = 'scoped memory for tpu_custom_call.1']
    #allocation4 [shape = 'u8[131072]{0}', space=vmem, size = 0x20000, scoped, tag = 'input window, operand 1, single buffered']
    #allocation5 [shape = 's32[1]{0}', space=sflag, size = 0x4, scoped, tag = 'scoped memory for tpu_custom_call.1']
    %9 = vsyncpa [#allocation3], 0
    %10 = vsyncpa [#allocation5], 0
    // Predicated region
    $region2: #{tpu_custom_call.1} parent=1 // pred_check
      _
    $region3: #{tpu_custom_call.1} parent=1 // pred_check_branch
      %12 = sbr.rel (0) target = $region5
    $region4: #{tpu_custom_call.1} parent=1 // pred_region
      %s14 = ssub.s32 128, 128
      %15 = vsyncadd [#allocation3], %s14
      %s16 = sshll.u32 [#allocation2], 4
      %s17 = int_to_ptr.vmem [resolvable:$true] %s16
      %22 = dma.hbm_to_vmem [thread:$0]  %s0, 128, %s17, [#allocation3], 64, 64, 4
    $region5: #{tpu_custom_call.1} parent=1 // pred_fallthru
      _
    // Predicated region
    $region6: #{tpu_custom_call.1} parent=1 // pred_check
      _
    $region7: #{tpu_custom_call.1} parent=1 // pred_check_branch
      %24 = sbr.rel (0) target = $region9
    $region8: #{tpu_custom_call.1} parent=1 // pred_region
      %s26 = ssub.s32 4096, 4096
      %27 = vsyncadd [#allocation5], %s26
      %s28 = sshll.u32 [#allocation4], 4
      %s29 = int_to_ptr.vmem [resolvable:$true] %s28
      %34 = dma.hbm_to_vmem [thread:$0]  %s1, 4096, %s29, [#allocation5], 256, 256, 16
    $region9: #{tpu_custom_call.1} parent=1 // pred_fallthru
      _
    // Predicated region
    $region10: #{tpu_custom_call.1} parent=1 // pred_check
      _
    $region11: #{tpu_custom_call.1} parent=1 // pred_check_branch
      %36 = sbr.rel (0) target = $region13
    $region12: #{tpu_custom_call.1} parent=1 // pred_region
      _
    $region13: #{tpu_custom_call.1} parent=1 // pred_fallthru
      _
    // Predicated region
    $region14: #{tpu_custom_call.1} parent=1 // pred_check
      _
    $region15: #{tpu_custom_call.1} parent=1 // pred_check_branch
      %38 = sbr.rel (0) target = $region17
    $region16: #{tpu_custom_call.1} parent=1 // pred_region
      _
    $region17: #{tpu_custom_call.1} parent=1 // pred_fallthru
      _
    // Predicated region
    $region18: #{tpu_custom_call.1} parent=1 // pred_check
      _
    $region19: #{tpu_custom_call.1} parent=1 // pred_check_branch
      %40 = sbr.rel (0) target = $region21
    $region20: #{tpu_custom_call.1} parent=1 // pred_region
      %41 = dma.done [#allocation3], 128
    $region21: #{tpu_custom_call.1} parent=1 // pred_fallthru
      _
    // Predicated region
    $region22: #{tpu_custom_call.1} parent=1 // pred_check
      _
    $region23: #{tpu_custom_call.1} parent=1 // pred_check_branch
      %43 = sbr.rel (0) target = $region25
    $region24: #{tpu_custom_call.1} parent=1 // pred_region
      %44 = dma.done [#allocation5], 4096
    $region25: #{tpu_custom_call.1} parent=1 // pred_fallthru
      _
    %v46 = vld [vmem:[#allocation2] sm:$0xf]
    %v47 = vld [vmem:[#allocation2 + $0x4] sm:$0xf]
    %v48 = vld [vmem:[#allocation4] sm:$0xff]
    %v49 = vld [vmem:[#allocation4 + $0x8] sm:$0xff]
    %v50 = vld [vmem:[#allocation4 + $0x10] sm:$0xff]
    %v51 = vld [vmem:[#allocation4 + $0x18] sm:$0xff]
    %v52 = vld [vmem:[#allocation4 + $0x20] sm:$0xff]
    %v53 = vld [vmem:[#allocation4 + $0x28] sm:$0xff]
    %v54 = vld [vmem:[#allocation4 + $0x30] sm:$0xff]
    %v55 = vld [vmem:[#allocation4 + $0x38] sm:$0xff]
    %v56 = vld [vmem:[#allocation4 + $0x40] sm:$0xff]
    %v57 = vld [vmem:[#allocation4 + $0x48] sm:$0xff]
    %v58 = vld [vmem:[#allocation4 + $0x50] sm:$0xff]
    %v59 = vld [vmem:[#allocation4 + $0x58] sm:$0xff]
    %v60 = vld [vmem:[#allocation4 + $0x60] sm:$0xff]
    %v61 = vld [vmem:[#allocation4 + $0x68] sm:$0xff]
    %v62 = vld [vmem:[#allocation4 + $0x70] sm:$0xff]
    %v63 = vld [vmem:[#allocation4 + $0x78] sm:$0xff]
    %v64 = vld [vmem:[#allocation4 + $0x80] sm:$0xff]
    %v65 = vld [vmem:[#allocation4 + $0x88] sm:$0xff]
    %v66 = vld [vmem:[#allocation4 + $0x90] sm:$0xff]
    %v67 = vld [vmem:[#allocation4 + $0x98] sm:$0xff]
    %v68 = vld [vmem:[#allocation4 + $0xa0] sm:$0xff]
    %v69 = vld [vmem:[#allocation4 + $0xa8] sm:$0xff]
    %v70 = vld [vmem:[#allocation4 + $0xb0] sm:$0xff]
    %v71 = vld [vmem:[#allocation4 + $0xb8] sm:$0xff]
    %v72 = vld [vmem:[#allocation4 + $0xc0] sm:$0xff]
    %v73 = vld [vmem:[#allocation4 + $0xc8] sm:$0xff]
    %v74 = vld [vmem:[#allocation4 + $0xd0] sm:$0xff]
    %v75 = vld [vmem:[#allocation4 + $0xd8] sm:$0xff]
    %v76 = vld [vmem:[#allocation4 + $0xe0] sm:$0xff]
    %v77 = vld [vmem:[#allocation4 + $0xe8] sm:$0xff]
    %v78 = vld [vmem:[#allocation4 + $0xf0] sm:$0xff]
    %v79 = vld [vmem:[#allocation4 + $0xf8] sm:$0xff]
    %v80 = vld [vmem:[%s2] sm:$0xf]
    %v82 = vlaneseq
    %v83 = vshrl.u32 %v82, 7
    %v84 = vsub.s32 0, %v83
    %v85 = vrot.slane %v80, %v84
    %v86 = vlaneseq
    %v87 = vshrl.u32 %v86, 7
    %v88 = vsub.s32 1, %v87
    %v89 = vrot.slane %v80, %v88
    %v90 = vlaneseq
    %v91 = vshrl.u32 %v90, 7
    %v92 = vsub.s32 2, %v91
    %v93 = vrot.slane %v80, %v92
    %v94 = vlaneseq
    %v95 = vshrl.u32 %v94, 7
    %v96 = vsub.s32 3, %v95
    %v97 = vrot.slane %v80, %v96
    %v104 = vunpack.c.l.b16 %v46
    %v105 = vunpack.c.l.b16 %v47
    %v106 = vpack.c.b16 %v105, %v104
    %v140 = vunpack.c.l.b16 %v48
    %v141 = vunpack.c.h.b16 %v48
    %v142 = vunpack.c.l.b16 %v49
    %v143 = vunpack.c.h.b16 %v49
    %v144 = vunpack.c.l.b16 %v50
    %v145 = vunpack.c.h.b16 %v50
    %v146 = vunpack.c.l.b16 %v51
    %v147 = vunpack.c.h.b16 %v51
    %v148 = vunpack.c.l.b16 %v52
    %v149 = vunpack.c.h.b16 %v52
    %v150 = vunpack.c.l.b16 %v53
    %v151 = vunpack.c.h.b16 %v53
    %v152 = vunpack.c.l.b16 %v54
    %v153 = vunpack.c.h.b16 %v54
    %v154 = vunpack.c.l.b16 %v55
    %v155 = vunpack.c.h.b16 %v55
    %v156 = vunpack.c.l.b16 %v56
    %v157 = vunpack.c.h.b16 %v56
    %v158 = vunpack.c.l.b16 %v57
    %v159 = vunpack.c.h.b16 %v57
    %v160 = vunpack.c.l.b16 %v58
    %v161 = vunpack.c.h.b16 %v58
    %v162 = vunpack.c.l.b16 %v59
    %v163 = vunpack.c.h.b16 %v59
    %v164 = vunpack.c.l.b16 %v60
    %v165 = vunpack.c.h.b16 %v60
    %v166 = vunpack.c.l.b16 %v61
    %v167 = vunpack.c.h.b16 %v61
    %v168 = vunpack.c.l.b16 %v62
    %v169 = vunpack.c.h.b16 %v62
    %v170 = vunpack.c.l.b16 %v63
    %v171 = vunpack.c.h.b16 %v63
    %v172 = vunpack.c.l.b16 %v64
    %v173 = vunpack.c.h.b16 %v64
    %v174 = vunpack.c.l.b16 %v65
    %v175 = vunpack.c.h.b16 %v65
    %v176 = vunpack.c.l.b16 %v66
    %v177 = vunpack.c.h.b16 %v66
    %v178 = vunpack.c.l.b16 %v67
    %v179 = vunpack.c.h.b16 %v67
    %v180 = vunpack.c.l.b16 %v68
    %v181 = vunpack.c.h.b16 %v68
    %v182 = vunpack.c.l.b16 %v69
    %v183 = vunpack.c.h.b16 %v69
    %v184 = vunpack.c.l.b16 %v70
    %v185 = vunpack.c.h.b16 %v70
    %v186 = vunpack.c.l.b16 %v71
    %v187 = vunpack.c.h.b16 %v71
    %v188 = vunpack.c.l.b16 %v72
    %v189 = vunpack.c.h.b16 %v72
    %v190 = vunpack.c.l.b16 %v73
    %v191 = vunpack.c.h.b16 %v73
    %v192 = vunpack.c.l.b16 %v74
    %v193 = vunpack.c.h.b16 %v74
    %v194 = vunpack.c.l.b16 %v75
    %v195 = vunpack.c.h.b16 %v75
    %v196 = vunpack.c.l.b16 %v76
    %v197 = vunpack.c.h.b16 %v76
    %v198 = vunpack.c.l.b16 %v77
    %v199 = vunpack.c.h.b16 %v77
    %v200 = vunpack.c.l.b16 %v78
    %v201 = vunpack.c.h.b16 %v78
    %v202 = vunpack.c.l.b16 %v79
    %v203 = vunpack.c.h.b16 %v79
    %v204 = vpack.c.b16 %v144, %v140
    %v205 = vpack.c.b16 %v145, %v141
    %v206 = vpack.c.b16 %v146, %v142
    %v207 = vpack.c.b16 %v147, %v143
    %v208 = vpack.c.b16 %v152, %v148
    %v209 = vpack.c.b16 %v153, %v149
    %v210 = vpack.c.b16 %v154, %v150
    %v211 = vpack.c.b16 %v155, %v151
    %v212 = vpack.c.b16 %v160, %v156
    %v213 = vpack.c.b16 %v161, %v157
    %v214 = vpack.c.b16 %v162, %v158
    %v215 = vpack.c.b16 %v163, %v159
    %v216 = vpack.c.b16 %v168, %v164
    %v217 = vpack.c.b16 %v169, %v165
    %v218 = vpack.c.b16 %v170, %v166
    %v219 = vpack.c.b16 %v171, %v167
    %v220 = vpack.c.b16 %v176, %v172
    %v221 = vpack.c.b16 %v177, %v173
    %v222 = vpack.c.b16 %v178, %v174
    %v223 = vpack.c.b16 %v179, %v175
    %v224 = vpack.c.b16 %v184, %v180
    %v225 = vpack.c.b16 %v185, %v181
    %v226 = vpack.c.b16 %v186, %v182
    %v227 = vpack.c.b16 %v187, %v183
    %v228 = vpack.c.b16 %v192, %v188
    %v229 = vpack.c.b16 %v193, %v189
    %v230 = vpack.c.b16 %v194, %v190
    %v231 = vpack.c.b16 %v195, %v191
    %v232 = vpack.c.b16 %v200, %v196
    %v233 = vpack.c.b16 %v201, %v197
    %v234 = vpack.c.b16 %v202, %v198
    %v235 = vpack.c.b16 %v203, %v199
    %268 = vmatprep.subr.bf16.mxu0 %v205
    %269 = vmatpush1.bf16.msra.mxu0 %v204
    %270 = vmatprep.subr.bf16.mxu0 %v209
    %271 = vmatpush1.bf16.msra.mxu0 %v208
    %272 = vmatprep.subr.bf16.mxu0 %v213
    %273 = vmatpush1.bf16.msra.mxu0 %v212
    %274 = vmatprep.subr.bf16.mxu0 %v217
    %275 = vmatpush1.bf16.msra.mxu0 %v216
    %276 = vmatprep.subr.bf16.mxu0 %v221
    %277 = vmatpush1.bf16.msra.mxu0 %v220
    %278 = vmatprep.subr.bf16.mxu0 %v225
    %279 = vmatpush1.bf16.msra.mxu0 %v224
    %280 = vmatprep.subr.bf16.mxu0 %v229
    %281 = vmatpush1.bf16.msra.mxu0 %v228
    %282 = vmatprep.subr.bf16.mxu0 %v233
    %283 = vmatpush1.bf16.msra.mxu0 %v232
    %284 = vmatprep.subr.bf16.mxu0 0
    %285 = vmatpush1.bf16.msra.mxu0 0
    %286 = vmatprep.subr.bf16.mxu0 0
    %287 = vmatpush1.bf16.msra.mxu0 0
    %288 = vmatprep.subr.bf16.mxu0 0
    %289 = vmatpush1.bf16.msra.mxu0 0
    %290 = vmatprep.subr.bf16.mxu0 0
    %291 = vmatpush1.bf16.msra.mxu0 0
    %292 = vmatprep.subr.bf16.mxu0 0
    %293 = vmatpush1.bf16.msra.mxu0 0
    %294 = vmatprep.subr.bf16.mxu0 0
    %295 = vmatpush1.bf16.msra.mxu0 0
    %296 = vmatprep.subr.bf16.mxu0 0
    %297 = vmatpush1.bf16.msra.mxu0 0
    %298 = vmatprep.subr.bf16.mxu0 0
    %299 = vmatpush1.bf16.msra.mxu0 0
    %300 = vmatprep.mubr.bf16.mxu0 0
    %301 = vmatmul.mubr.bf16.gmra.mrb[0].mxu0 %v106
    %v302 = vpop.f32.mrb[0].mxu0
    %v303 = vadd.f32 %v85, %v302
    %v304 = vpop.f32.mrb[0].mxu0
    %v305 = vadd.f32 %v89, %v304
    %v306 = vpop.f32.mrb[0].mxu0
    %v307 = vadd.f32 %v85, %v306
    %v308 = vpop.f32.mrb[0].mxu0
    %v309 = vadd.f32 %v89, %v308
    %310 = vdwg.mxu0
    %311 = vmatprep.subr.bf16.mxu0 %v207
    %312 = vmatpush1.bf16.msra.mxu0 %v206
    %313 = vmatprep.subr.bf16.mxu0 %v211
    %314 = vmatpush1.bf16.msra.mxu0 %v210
    %315 = vmatprep.subr.bf16.mxu0 %v215
    %316 = vmatpush1.bf16.msra.mxu0 %v214
    %317 = vmatprep.subr.bf16.mxu0 %v219
    %318 = vmatpush1.bf16.msra.mxu0 %v218
    %319 = vmatprep.subr.bf16.mxu0 %v223
    %320 = vmatpush1.bf16.msra.mxu0 %v222
    %321 = vmatprep.subr.bf16.mxu0 %v227
    %322 = vmatpush1.bf16.msra.mxu0 %v226
    %323 = vmatprep.subr.bf16.mxu0 %v231
    %324 = vmatpush1.bf16.msra.mxu0 %v230
    %325 = vmatprep.subr.bf16.mxu0 %v235
    %326 = vmatpush1.bf16.msra.mxu0 %v234
    %327 = vmatprep.subr.bf16.mxu0 0
    %328 = vmatpush1.bf16.msra.mxu0 0
    %329 = vmatprep.subr.bf16.mxu0 0
    %330 = vmatpush1.bf16.msra.mxu0 0
    %331 = vmatprep.subr.bf16.mxu0 0
    %332 = vmatpush1.bf16.msra.mxu0 0
    %333 = vmatprep.subr.bf16.mxu0 0
    %334 = vmatpush1.bf16.msra.mxu0 0
    %335 = vmatprep.subr.bf16.mxu0 0
    %336 = vmatpush1.bf16.msra.mxu0 0
    %337 = vmatprep.subr.bf16.mxu0 0
    %338 = vmatpush1.bf16.msra.mxu0 0
    %339 = vmatprep.subr.bf16.mxu0 0
    %340 = vmatpush1.bf16.msra.mxu0 0
    %341 = vmatprep.subr.bf16.mxu0 0
    %342 = vmatpush1.bf16.msra.mxu0 0
    %343 = vmatprep.mubr.bf16.mxu0 0
    %344 = vmatmul.mubr.bf16.gmra.mrb[0].mxu0 %v106
    %v345 = vpop.f32.mrb[0].mxu0
    %v346 = vadd.f32 %v93, %v345
    %v347 = vpop.f32.mrb[0].mxu0
    %v348 = vadd.f32 %v97, %v347
    %v349 = vpop.f32.mrb[0].mxu0
    %v350 = vadd.f32 %v93, %v349
    %v351 = vpop.f32.mrb[0].mxu0
    %v352 = vadd.f32 %v97, %v351
    %353 = vdwg.mxu0
    %v354 = vmax.f32 %v303, 0.0
    %v355 = vmax.f32 %v305, 0.0
    %v356 = vmax.f32 %v346, 0.0
    %v357 = vmax.f32 %v348, 0.0
    %v358 = vmax.f32 %v307, 0.0
    %v359 = vmax.f32 %v309, 0.0
    %v360 = vmax.f32 %v350, 0.0
    %v361 = vmax.f32 %v352, 0.0
    %v362 = vld [vmem:[%s3] sm:$0xf]
    %v364 = vlaneseq
    %v365 = vshrl.u32 %v364, 7
    %v366 = vsub.s32 0, %v365
    %v367 = vrot.slane %v362, %v366
    %v368 = vlaneseq
    %v369 = vshrl.u32 %v368, 7
    %v370 = vsub.s32 1, %v369
    %v371 = vrot.slane %v362, %v370
    %v372 = vlaneseq
    %v373 = vshrl.u32 %v372, 7
    %v374 = vsub.s32 2, %v373
    %v375 = vrot.slane %v362, %v374
    %v376 = vlaneseq
    %v377 = vshrl.u32 %v376, 7
    %v378 = vsub.s32 3, %v377
    %v379 = vrot.slane %v362, %v378
    %v384 = vmul.f32 %v354, %v367
    %v385 = vmul.f32 %v355, %v371
    %v386 = vmul.f32 %v356, %v375
    %v387 = vmul.f32 %v357, %v379
    %v388 = vmul.f32 %v358, %v367
    %v389 = vmul.f32 %v359, %v371
    %v390 = vmul.f32 %v360, %v375
    %v391 = vmul.f32 %v361, %v379
    %v392 = vadd.f32 %v384, %v385
    %v393 = vadd.f32 %v392, %v386
    %v394 = vadd.f32 %v393, %v387
    %395 = vadd.xlane.f32.xlu0 %v394
    %v396 = vpop.xlane.xlu0 %395
    %v397 = vadd.f32 %v388, %v389
    %v398 = vadd.f32 %v397, %v390
    %v399 = vadd.f32 %v398, %v391
    %400 = vadd.xlane.f32.xlu0 %v399
    %v401 = vpop.xlane.xlu0 %400
    %vm402 = vcmask 7168
    %403 = vst.msk [vmem:[%s4] sm:$0xff] %vm402, %v396
    %404 = vst.msk [vmem:[%s4 + $0x8] sm:$0xff] %vm402, %v401
    // Predicated region
    $region26: #{tpu_custom_call.1} parent=1 // pred_check
      _
    $region27: #{tpu_custom_call.1} parent=1 // pred_check_branch
      %406 = sbr.rel (0) target = $region29
    $region28: #{tpu_custom_call.1} parent=1 // pred_region
      _
    $region29: #{tpu_custom_call.1} parent=1 // pred_fallthru
      _
    // Predicated region
    $region30: #{tpu_custom_call.1} parent=1 // pred_check
      _
    $region31: #{tpu_custom_call.1} parent=1 // pred_check_branch
      %408 = sbr.rel (0) target = $region33
    $region32: #{tpu_custom_call.1} parent=1 // pred_region
      _
    $region33: #{tpu_custom_call.1} parent=1 // pred_fallthru
      _
    %409 = vsyncpa [#allocation3], 1
    %410 = vsyncpa [#allocation5], 1

</llo_original>
